<compile_context>
chip_gen: v7x
topology: tpu7x:2x2x1
jax: 0.10.0
libtpu: 0.0.40
codegen_flags: <defaults>
</compile_context>

<pallas_src>
import functools

import jax
import jax.numpy as jnp
from jax import lax
from jax.experimental import pallas as pl
from jax.experimental.pallas import tpu as pltpu


# ---------------------------------------------------------------------------
# Per-generation VMEM parameters
# ---------------------------------------------------------------------------

def _tpu_vmem_bytes():
    try:
        return int(pltpu.get_tpu_info().vmem_capacity_bytes)
    except Exception:
        return 64 << 20        # conservative default (v7x has 64 MiB per TC)


_VMEM_CAP = _tpu_vmem_bytes()
if _VMEM_CAP >= (100 << 20):   # v5e / v6e: 128 MiB VMEM -> use it
    _BUDGET_BYTES = 48 << 20
    _VMEM_LIMIT = 96 << 20
else:                          # v7x: 64 MiB VMEM -> stay well clear
    _BUDGET_BYTES = 20 << 20
    _VMEM_LIMIT = 48 << 20

_COMPILER_PARAMS = pltpu.CompilerParams(
    dimension_semantics=("parallel",),
    vmem_limit_bytes=_VMEM_LIMIT,
)


# ---------------------------------------------------------------------------
# Tiling heuristics
# ---------------------------------------------------------------------------

_SUBLANE_ALIGN = {1: 32, 2: 16, 4: 8}  # itemsize (bytes) -> sublane packing


def _round_up(a, b):
    return -(-a // b) * b


def _pick_tile_rows(rows, features, stream_itemsizes, f32_temps=0,
                    budget_bytes=_BUDGET_BYTES, target_steps=4):
    """Pick a row tile that is:
      * large (multi-MiB) to amortize ~0.35us/step pipeline overhead,
      * small enough that double-buffered pipeline I/O *plus* in-kernel f32/i32
        temporaries fit a conservative VMEM budget (safe on v7x's 64 MiB),
      * aligned to the dtype sublane packing (8 f32 / 16 bf16 / 32 int8),
      * split into >= target_steps grid steps (>=2 per TC on v7x) when the
        problem is big enough, so DMA overlaps compute on both cores."""
    align = _SUBLANE_ALIGN.get(min(stream_itemsizes), 8)
    io_per_row = features * sum(stream_itemsizes)
    # 2x for double-buffered pipeline I/O + single-buffered 4-byte temporaries.
    per_row = 2 * io_per_row + f32_temps * features * 4
    tile = max(align, budget_bytes // max(per_row, 1))
    tile = min(tile, 2048)                       # diminishing returns past this

    # Megacore / pipelining: >= target_steps steps, each moving >= ~1 MiB.
    min_rows = max(align, -(-(1 << 20) // max(io_per_row, 1)))
    step_rows = max(min_rows, -(-rows // target_steps))
    tile = min(tile, _round_up(step_rows, align))

    tile = min(tile, _round_up(rows, align))     # don't exceed the problem
    return max(align, (tile // align) * align)   # sublane alignment


def _lane_dense_shape(rows, features):
    """Elementwise kernels don't care about the feature axis; pick a layout
    whose last dim is a multiple of 128 so stores are unmasked `vst`."""
    if features % 128 == 0:
        return rows, features
    total = rows * features
    for w in (2048, 1024, 512, 384, 256, 128):
        if total % w == 0:
            return total // w, w
    return rows, features   # fall back: masked partial stores


# ---------------------------------------------------------------------------
# Kernel 1: LayerNormalization (last-dim, PyTorch unbiased-std semantics)
# ---------------------------------------------------------------------------

def _layernorm_kernel(x_ref, alpha_ref, bias_ref, o_ref, *, eps, features,
                      approx_recip):
    # x_ref: (TILE_ROWS, F); alpha_ref/bias_ref: (1, F) already f32.
    x = x_ref[...].astype(jnp.float32)

    # Single stats pass: sum and sum-of-squares (one sweep over the tile).
    s = jnp.sum(x, axis=-1, keepdims=True)
    sq = jnp.sum(x * x, axis=-1, keepdims=True)
    mean = s * jnp.float32(1.0 / features)
    if features > 1:
        # unbiased variance (torch.Tensor.std divides by N-1); clamp the tiny
        # negative values the E[x^2]-mean^2 cancellation can produce.
        var = jnp.maximum(sq - s * mean, 0.0) * jnp.float32(1.0 / (features - 1))
    else:
        var = jnp.full_like(s, jnp.nan)   # 0/0, same as torch for features==1

    # Per-row 1/(std+eps): EUP approx reciprocal when output rounding hides it.
    inv = pl.reciprocal(jnp.sqrt(var) + jnp.float32(eps), approx=approx_recip)

    out = ((x - mean) * inv) * alpha_ref[...] + bias_ref[...]
    o_ref[...] = out.astype(o_ref.dtype)


def layer_normalization(x, alpha, bias, eps=1e-6, tile_rows=None):
    """x: (..., F); alpha, bias: (F,). Returns same shape/dtype as x."""
    orig_shape = x.shape
    features = orig_shape[-1]
    rows = 1
    for d in orig_shape[:-1]:
        rows *= d
    x2 = x.reshape(rows, features)
    # Tiny (1, F) params: cast to f32 once in the wrapper; constant index_map
    # keeps them VMEM-resident, no per-step cast in the kernel body.
    alpha2 = alpha.reshape(1, features).astype(jnp.float32)
    bias2 = bias.reshape(1, features).astype(jnp.float32)

    isz = jnp.dtype(x.dtype).itemsize
    if tile_rows is None:
        # streams: x in + out; ~2 tile-sized f32 temporaries live in the body.
        tile_rows = _pick_tile_rows(rows, features, [isz, isz], f32_temps=2)

    grid = (pl.cdiv(rows, tile_rows),)   # partial last block handled by pipeline
    kernel = functools.partial(
        _layernorm_kernel, eps=float(eps), features=features,
        approx_recip=bool(jnp.dtype(x.dtype) != jnp.float32))

    out = pl.pallas_call(
        kernel,
        out_shape=jax.ShapeDtypeStruct((rows, features), x.dtype),
        grid_spec=pltpu.PrefetchScalarGridSpec(
            num_scalar_prefetch=0,
            grid=grid,
            in_specs=[
                pl.BlockSpec((tile_rows, features), lambda i: (i, 0)),
                pl.BlockSpec((1, features), lambda i: (0, 0)),
                pl.BlockSpec((1, features), lambda i: (0, 0)),
            ],
            out_specs=pl.BlockSpec((tile_rows, features), lambda i: (i, 0)),
        ),
        compiler_params=_COMPILER_PARAMS,
    )(x2, alpha2, bias2)

    return out.reshape(orig_shape)


# ---------------------------------------------------------------------------
# Kernel 2: residual add (+ inverted dropout on the sublayer output)
# ---------------------------------------------------------------------------

def _residual_add_kernel(x_ref, y_ref, o_ref):
    # dropout_p == 0 path: plain add (dropout is identity).  y stays in its
    # native dtype; jnp promotion handles mixed dtypes, result cast to x dtype.
    o_ref[...] = (x_ref[...] + y_ref[...]).astype(o_ref.dtype)


def _to_i32(v):
    v &= 0xFFFFFFFF
    return v - (1 << 32) if v >= (1 << 31) else v


_MIX1 = _to_i32(0x7FEB352D)   # lowbias32 mixer constants (int32 two's complement)
_MIX2 = _to_i32(0x846CA68B)


def _residual_dropout_add_kernel(seed_ref, x_ref, y_ref, o_ref, *, p):
    # Inverted dropout (training-mode torch semantics) on y, then residual add.
    # Stateless counter-based mask: hash(global element index + seed) -> keep.
    # Pure int32 VPU ops (no pltpu.prng_*), so it lowers everywhere and adds
    # no HBM traffic.  NOTE: mask depends on tile/grid layout and seed only.
    tr, tc = o_ref.shape
    row0 = pl.program_id(0) * tr
    r = lax.broadcasted_iota(jnp.int32, (tr, tc), 0) + row0
    c = lax.broadcasted_iota(jnp.int32, (tr, tc), 1)
    h = r * jnp.int32(tc) + c + seed_ref[0]               # wraps mod 2^32
    h = (h ^ lax.shift_right_logical(h, 16)) * jnp.int32(_MIX1)
    h = (h ^ lax.shift_right_logical(h, 15)) * jnp.int32(_MIX2)
    h = h ^ lax.shift_right_logical(h, 16)
    thresh = int(round(float(p) * float(1 << 24)))
    keep = (h & jnp.int32(0xFFFFFF)) >= jnp.int32(thresh)  # P(keep) = 1 - p

    scale = jnp.float32(1.0 / (1.0 - p)) if p < 1.0 else jnp.float32(0.0)
    y = y_ref[...].astype(jnp.float32)
    x = x_ref[...].astype(jnp.float32)
    o_ref[...] = (x + jnp.where(keep, y * scale, jnp.float32(0.0))).astype(o_ref.dtype)


def residual_connection(x, sublayer, alpha, bias, *, dropout_p=0.0, eps=1e-6,
                        dropout_seed=0, tile_rows=None):
    """out = x + dropout(sublayer(LayerNormalization(x)))."""
    normed = layer_normalization(x, alpha, bias, eps=eps, tile_rows=tile_rows)
    # TODO(synk): `sublayer` is an arbitrary user callable (e.g. MHA); it runs as
    # plain JAX between the two Pallas kernels and cannot be fused generically.
    y = sublayer(normed)

    orig_shape = x.shape
    features = orig_shape[-1]
    rows = 1
    for d in orig_shape[:-1]:
        rows *= d

    # Lane-dense layout for the purely elementwise residual kernel (free
    # contiguous reshape); keep y in its NATIVE dtype (cast inside the kernel).
    r_rows, r_cols = _lane_dense_shape(rows, features)
    x2 = x.reshape(r_rows, r_cols)
    y2 = y.reshape(r_rows, r_cols)

    x_isz = jnp.dtype(x.dtype).itemsize
    y_isz = jnp.dtype(y.dtype).itemsize
    if dropout_p <= 0.0:
        tr = _pick_tile_rows(r_rows, r_cols, [x_isz, y_isz, x_isz], f32_temps=1)
    else:
        # dropout path materializes several tile-sized f32/i32 temporaries
        # (x/y upcasts, iota, hash, where) -> budget them explicitly.
        tr = _pick_tile_rows(r_rows, r_cols, [x_isz, y_isz, x_isz], f32_temps=5)
    grid = (pl.cdiv(r_rows, tr),)

    if dropout_p <= 0.0:
        out = pl.pallas_call(
            _residual_add_kernel,
            out_shape=jax.ShapeDtypeStruct((r_rows, r_cols), x.dtype),
            grid_spec=pltpu.PrefetchScalarGridSpec(
                num_scalar_prefetch=0,
                grid=grid,
                in_specs=[
                    pl.BlockSpec((tr, r_cols), lambda i: (i, 0)),
                    pl.BlockSpec((tr, r_cols), lambda i: (i, 0)),
                ],
                out_specs=pl.BlockSpec((tr, r_cols), lambda i: (i, 0)),
            ),
            compiler_params=_COMPILER_PARAMS,
        )(x2, y2)
    else:
        seed = jnp.asarray([dropout_seed], dtype=jnp.int32)
        kernel = functools.partial(_residual_dropout_add_kernel, p=float(dropout_p))
        out = pl.pallas_call(
            kernel,
            out_shape=jax.ShapeDtypeStruct((r_rows, r_cols), x.dtype),
            grid_spec=pltpu.PrefetchScalarGridSpec(
                num_scalar_prefetch=1,
                grid=grid,
                in_specs=[
                    pl.BlockSpec((tr, r_cols), lambda i, s: (i, 0)),
                    pl.BlockSpec((tr, r_cols), lambda i, s: (i, 0)),
                ],
                out_specs=pl.BlockSpec((tr, r_cols), lambda i, s: (i, 0)),
            ),
            compiler_params=_COMPILER_PARAMS,
        )(seed, x2, y2)

    return out.reshape(orig_shape)


# ---------------------------------------------------------------------------
# Demo / correctness check
# ---------------------------------------------------------------------------

if __name__ == "__main__":
    # Small transformer-ish shapes; hidden=256 keeps the lane axis dense (>=128).
    batch, seq, hidden = 2, 8, 256
    key = jax.random.PRNGKey(0)
    kx, kw = jax.random.split(key)
    x = jax.random.normal(kx, (batch, seq, hidden), dtype=jnp.float32)

    # Parameters matching nn.Parameter(torch.ones / torch.zeros)
    alpha = jnp.ones((hidden,), dtype=jnp.float32)
    bias = jnp.zeros((hidden,), dtype=jnp.float32)

    # Deterministic stand-in for the sublayer (e.g. an MHA/FFN block).
    w = 0.05 * jax.random.normal(kw, (hidden, hidden), dtype=jnp.float32)
    sublayer = lambda t: jnp.tanh(t @ w)

    eps = 1e-6

    # --- dropout_p = 0 (eval-mode dropout == identity): reference check ---
    out = residual_connection(x, sublayer, alpha, bias, dropout_p=0.0, eps=eps)
    out = jax.block_until_ready(out)

    mean = jnp.mean(x, axis=-1, keepdims=True)
    std = jnp.sqrt(jnp.sum((x - mean) ** 2, axis=-1, keepdims=True) / (hidden - 1))
    normed_ref = alpha * (x - mean) / (std + eps) + bias
    ref = x + sublayer(normed_ref)
    assert jnp.allclose(out, ref, atol=1e-4, rtol=1e-4), "mismatch vs reference (p=0)"

    # --- dropout_p = 0.5 (training-mode): structural check of the fused kernel ---
    y_k = sublayer(layer_normalization(x, alpha, bias, eps=eps))  # what the kernel sees
    out_drop = residual_connection(x, sublayer, alpha, bias,
                                   dropout_p=0.5, eps=eps, dropout_seed=123)
    out_drop = jax.block_until_ready(out_drop)
    delta = out_drop - x
    kept_val = y_k * 2.0  # 1 / (1 - p)
    is_drop = jnp.abs(delta) <= 1e-6
    is_keep = jnp.abs(delta - kept_val) <= 1e-4 + 1e-4 * jnp.abs(kept_val)
    assert bool(jnp.all(is_drop | is_keep)), "dropout+residual values inconsistent"
    drop_frac = float(jnp.mean(is_drop.astype(jnp.float32)))
    assert 0.2 < drop_frac < 0.8, f"dropout rate looks wrong: {drop_frac}"

    print("KERNEL_OK")
</pallas_src>

<mosaic_0001>
module attributes {stable_mosaic.version = 11 : i64} {
  func.func @_layernorm_kernel(%arg0: i32, %arg1: memref<16x256xf32, #tpu.memory_space<vmem>>, %arg2: memref<1x256xf32, #tpu.memory_space<vmem>>, %arg3: memref<1x256xf32, #tpu.memory_space<vmem>>, %arg4: memref<16x256xf32, #tpu.memory_space<vmem>>) attributes {dimension_semantics = [#tpu.dimension_semantics<parallel>], iteration_bounds = array<i64: 1>, scalar_prefetch = 0 : i64, scratch_operands = 0 : i64, tpu.core_type = #tpu.core_type<tc>, window_params = [{transform_indices = @transform_0, window_bounds = array<i64: 16, 256>}, {pipeline_mode = #tpu.pipeline_mode<synchronous>, transform_indices = @transform_1, window_bounds = array<i64: 1, 256>}, {pipeline_mode = #tpu.pipeline_mode<synchronous>, transform_indices = @transform_2, window_bounds = array<i64: 1, 256>}, {transform_indices = @transform_3, window_bounds = array<i64: 16, 256>}]} {
    %c0 = arith.constant 0 : index
    %c0_0 = arith.constant 0 : index
    %0 = vector.load %arg1[%c0, %c0_0] : memref<16x256xf32, #tpu.memory_space<vmem>>, vector<16x256xf32>
    %cst = arith.constant dense<0.000000e+00> : vector<16xf32>
    %1 = vector.multi_reduction <add>, %0, %cst [1] : vector<16x256xf32> to vector<16xf32>
    %2 = vector.shape_cast %1 : vector<16xf32> to vector<16x1xf32>
    %3 = arith.mulf %0, %0 : vector<16x256xf32>
    %cst_1 = arith.constant dense<0.000000e+00> : vector<16xf32>
    %4 = vector.multi_reduction <add>, %3, %cst_1 [1] : vector<16x256xf32> to vector<16xf32>
    %5 = vector.shape_cast %4 : vector<16xf32> to vector<16x1xf32>
    %cst_2 = arith.constant 3.906250e-03 : f32
    %6 = vector.broadcast %cst_2 : f32 to vector<16x1xf32>
    %7 = arith.mulf %2, %6 : vector<16x1xf32>
    %8 = arith.mulf %2, %7 : vector<16x1xf32>
    %9 = arith.subf %5, %8 : vector<16x1xf32>
    %cst_3 = arith.constant 0.000000e+00 : f32
    %10 = vector.broadcast %cst_3 : f32 to vector<16x1xf32>
    %11 = arith.maximumf %9, %10 : vector<16x1xf32>
    %cst_4 = arith.constant 0.00392156886 : f32
    %12 = vector.broadcast %cst_4 : f32 to vector<16x1xf32>
    %13 = arith.mulf %11, %12 : vector<16x1xf32>
    %14 = math.sqrt %13 : vector<16x1xf32>
    %cst_5 = arith.constant 9.99999997E-7 : f32
    %15 = vector.broadcast %cst_5 : f32 to vector<16x1xf32>
    %16 = arith.addf %14, %15 : vector<16x1xf32>
    %17 = tpu.reciprocal %16 : vector<16x1xf32> -> vector<16x1xf32>
    %18 = vector.broadcast %7 : vector<16x1xf32> to vector<16x256xf32>
    %19 = arith.subf %0, %18 : vector<16x256xf32>
    %20 = vector.broadcast %17 : vector<16x1xf32> to vector<16x256xf32>
    %21 = arith.mulf %19, %20 : vector<16x256xf32>
    %c0_6 = arith.constant 0 : index
    %c0_7 = arith.constant 0 : index
    %22 = vector.load %arg2[%c0_6, %c0_7] : memref<1x256xf32, #tpu.memory_space<vmem>>, vector<1x256xf32>
    %23 = vector.broadcast %22 : vector<1x256xf32> to vector<16x256xf32>
    %24 = arith.mulf %21, %23 : vector<16x256xf32>
    %c0_8 = arith.constant 0 : index
    %c0_9 = arith.constant 0 : index
    %25 = vector.load %arg3[%c0_8, %c0_9] : memref<1x256xf32, #tpu.memory_space<vmem>>, vector<1x256xf32>
    %26 = vector.broadcast %25 : vector<1x256xf32> to vector<16x256xf32>
    %27 = arith.addf %24, %26 : vector<16x256xf32>
    %c0_10 = arith.constant 0 : index
    %c0_11 = arith.constant 0 : index
    %28 = vector.load %arg4[%c0_10, %c0_11] : memref<16x256xf32, #tpu.memory_space<vmem>>, vector<16x256xf32>
    tpu.vector_store %arg4[%c0_10, %c0_11], %27 {strides = array<i32>} : memref<16x256xf32, #tpu.memory_space<vmem>>, vector<16x256xf32>,
    return
  }
  func.func @transform_0(%arg0: i32) -> (i32, i32) {
    %c0_i32 = arith.constant 0 : i32
    %c0_i32_0 = arith.constant 0 : i32
    return %arg0, %c0_i32 : i32, i32
  }
  func.func @transform_1(%arg0: i32) -> (i32, i32) {
    %c0_i32 = arith.constant 0 : i32
    %c0_i32_0 = arith.constant 0 : i32
    %c0_i32_1 = arith.constant 0 : i32
    return %c0_i32, %c0_i32_0 : i32, i32
  }
  func.func @transform_2(%arg0: i32) -> (i32, i32) {
    %c0_i32 = arith.constant 0 : i32
    %c0_i32_0 = arith.constant 0 : i32
    %c0_i32_1 = arith.constant 0 : i32
    return %c0_i32, %c0_i32_0 : i32, i32
  }
  func.func @transform_3(%arg0: i32) -> (i32, i32) {
    %c0_i32 = arith.constant 0 : i32
    %c0_i32_0 = arith.constant 0 : i32
    return %arg0, %c0_i32 : i32, i32
  }
}

</mosaic_0001>

<llo_original>
// kernel: tpu_custom_call.1
$region0: #{tpu_custom_call.1}
  #allocation0 [shape = 'u32[]', space=smem, size = 0x4, offset = 0x4, fixed_abs, tag = 'smem constant byte address 0x4 - core index']
  #allocation1 [shape = 'u32[144,128]{1,0:T(1,128)}', space=vmem, size = 0x12000, scoped, tag = 'internal scratch']
  %s0 = inlined_call_operand.hbm [shape: f32[16,256], index: 0, kind: input, shape index: {}]
  %s1 = inlined_call_operand.vmem [shape: f32[1,256], index: 1, kind: input, shape index: {}]
  %s2 = inlined_call_operand.vmem [shape: f32[1,256], index: 2, kind: input, shape index: {}]
  %s3 = inlined_call_operand.hbm [shape: f32[16,256], index: 3, kind: output, shape index: {}]
  %s4 = sld [smem:[#allocation0]]
  $region26: #{tpu_custom_call.1} parent=0
    _
  %s6 = ssub.s32 1, %s4
  %s7 = scalar_select 0, %s6, %s4
  $region1: #{tpu_custom_call.1} parent=0
    #allocation2 [shape = 'u8[16384]{0}', space=vmem, size = 0x4000, scoped, tag = 'input window, operand 0, single buffered']
    #allocation3 [shape = 's32[1]{0}', space=sflag, size = 0x4, scoped, tag = 'scoped memory for tpu_custom_call.1']
    #allocation4 [shape = 's32[1]{0}', space=sflag, size = 0x4, scoped, tag = 'scoped memory for tpu_custom_call.1']
    #allocation5 [shape = 'u8[16384]{0}', space=vmem, size = 0x4000, scoped, tag = 'output window, operand 0, single buffered']
    %8 = vsyncpa [#allocation3], 0
    %9 = vsyncpa [#allocation4], 0
    // Predicated region
    $region2: #{tpu_custom_call.1} parent=1 // pred_check
      _
    $region3: #{tpu_custom_call.1} parent=1 // pred_check_branch
      %11 = sbr.rel (0) target = $region5
    $region4: #{tpu_custom_call.1} parent=1 // pred_region
      %s13 = ssub.s32 512, 512
      %14 = vsyncadd [#allocation3], %s13
      %s15 = sshll.u32 [#allocation2], 4
      %s16 = int_to_ptr.vmem [resolvable:$true] %s15
      %21 = dma.hbm_to_vmem [thread:$0]  %s0, 512, %s16, [#allocation3], 256, 256, 16
    $region5: #{tpu_custom_call.1} parent=1 // pred_fallthru
      _
    // Predicated region
    $region6: #{tpu_custom_call.1} parent=1 // pred_check
      _
    $region7: #{tpu_custom_call.1} parent=1 // pred_check_branch
      %23 = sbr.rel (0) target = $region9
    $region8: #{tpu_custom_call.1} parent=1 // pred_region
      _
    $region9: #{tpu_custom_call.1} parent=1 // pred_fallthru
      _
    // Predicated region
    $region10: #{tpu_custom_call.1} parent=1 // pred_check
      _
    $region11: #{tpu_custom_call.1} parent=1 // pred_check_branch
      %25 = sbr.rel (0) target = $region13
    $region12: #{tpu_custom_call.1} parent=1 // pred_region
      _
    $region13: #{tpu_custom_call.1} parent=1 // pred_fallthru
      _
    // Predicated region
    $region14: #{tpu_custom_call.1} parent=1 // pred_check
      _
    $region15: #{tpu_custom_call.1} parent=1 // pred_check_branch
      %27 = sbr.rel (0) target = $region17
    $region16: #{tpu_custom_call.1} parent=1 // pred_region
      %28 = dma.done [#allocation3], 512
    $region17: #{tpu_custom_call.1} parent=1 // pred_fallthru
      _
    %v29 = vld [vmem:[#allocation2] sm:$0xff]
    %v30 = vld [vmem:[#allocation2 + $0x8] sm:$0xff]
    %v31 = vld [vmem:[#allocation2 + $0x10] sm:$0xff]
    %v32 = vld [vmem:[#allocation2 + $0x18] sm:$0xff]
    %v33 = vadd.f32 %v29, %v30
    %34 = vadd.xlane.f32.xlu0 %v33
    %v35 = vpop.xlane.xlu0 %34
    %v36 = vadd.f32 %v31, %v32
    %37 = vadd.xlane.f32.xlu0 %v36
    %v38 = vpop.xlane.xlu0 %37
    %v39 = vmul.f32 %v29, %v29
    %v40 = vmul.f32 %v30, %v30
    %v41 = vmul.f32 %v31, %v31
    %v42 = vmul.f32 %v32, %v32
    %v43 = vadd.f32 %v39, %v40
    %44 = vadd.xlane.f32.xlu0 %v43
    %v45 = vpop.xlane.xlu0 %44
    %v46 = vadd.f32 %v41, %v42
    %47 = vadd.xlane.f32.xlu0 %v46
    %v48 = vpop.xlane.xlu0 %47
    %v49 = vmul.f32 %v35, 0.00390625
    %v50 = vmul.f32 %v38, 0.00390625
    %v51 = vmul.f32 %v35, %v49
    %v52 = vmul.f32 %v38, %v50
    %v53 = vsub.f32 %v45, %v51
    %v54 = vsub.f32 %v48, %v52
    %v55 = vmax.f32 %v53, 0.0
    %v56 = vmax.f32 %v54, 0.0
    %v57 = vmul.f32 %v55, 0.003921569
    %v58 = vmul.f32 %v56, 0.003921569
    %v59 = vrsqrt.pop %v57
    %v60 = vmul.f32 %v57, %v59
    %vm61 = vcmp.eq.f32.partialorder %v57, inf
    %v62 = vsel %vm61, %v57, %v60
    %vm63 = vcmp.eq.f32.partialorder %v57, 0.0
    %v64 = vand.u32 %v57, 2147483648
    %v65 = vsel %vm63, %v64, %v62
    %v66 = vrsqrt.pop %v58
    %v67 = vmul.f32 %v58, %v66
    %vm68 = vcmp.eq.f32.partialorder %v58, inf
    %v69 = vsel %vm68, %v58, %v67
    %vm70 = vcmp.eq.f32.partialorder %v58, 0.0
    %v71 = vand.u32 %v58, 2147483648
    %v72 = vsel %vm70, %v71, %v69
    %v73 = vadd.f32 %v65, 1e-06
    %v74 = vadd.f32 %v72, 1e-06
    %v75 = vrcp.pop %v73
    %v76 = vrcp.pop %v74
    %v77 = vsub.f32 %v29, %v49
    %v78 = vsub.f32 %v30, %v49
    %v79 = vsub.f32 %v31, %v50
    %v80 = vsub.f32 %v32, %v50
    %v81 = vmul.f32 %v77, %v75
    %v82 = vmul.f32 %v78, %v75
    %v83 = vmul.f32 %v79, %v76
    %v84 = vmul.f32 %v80, %v76
    %v85 = vld [vmem:[%s1] sm:$0x3]
    %v87 = vlaneseq
    %v88 = vshrl.u32 %v87, 7
    %v89 = vsub.s32 0, %v88
    %v90 = vrot.slane %v85, %v89
    %v91 = vlaneseq
    %v92 = vshrl.u32 %v91, 7
    %v93 = vsub.s32 1, %v92
    %v94 = vrot.slane %v85, %v93
    %v97 = vmul.f32 %v81, %v90
    %v98 = vmul.f32 %v82, %v94
    %v99 = vmul.f32 %v83, %v90
    %v100 = vmul.f32 %v84, %v94
    %v101 = vld [vmem:[%s2] sm:$0x3]
    %v103 = vlaneseq
    %v104 = vshrl.u32 %v103, 7
    %v105 = vsub.s32 0, %v104
    %v106 = vrot.slane %v101, %v105
    %v107 = vlaneseq
    %v108 = vshrl.u32 %v107, 7
    %v109 = vsub.s32 1, %v108
    %v110 = vrot.slane %v101, %v109
    %v113 = vadd.f32 %v97, %v106
    %v114 = vadd.f32 %v98, %v110
    %v115 = vadd.f32 %v99, %v106
    %v116 = vadd.f32 %v100, %v110
    %117 = vst [vmem:[#allocation5] sm:$0xff] %v113
    %118 = vst [vmem:[#allocation5 + $0x8] sm:$0xff] %v114
    %119 = vst [vmem:[#allocation5 + $0x10] sm:$0xff] %v115
    %120 = vst [vmem:[#allocation5 + $0x18] sm:$0xff] %v116
    // Predicated region
    $region18: #{tpu_custom_call.1} parent=1 // pred_check
      _
    $region19: #{tpu_custom_call.1} parent=1 // pred_check_branch
      %122 = sbr.rel (0) target = $region21
    $region20: #{tpu_custom_call.1} parent=1 // pred_region
      %s124 = ssub.s32 512, 512
      %125 = vsyncadd [#allocation4], %s124
      %s126 = sshll.u32 [#allocation5], 4
      %s127 = int_to_ptr.vmem [resolvable:$true] %s126
      %132 = dma.vmem_to_hbm [thread:$0]  %s127, 512, %s3, [#allocation4], 256, 256, 16
    $region21: #{tpu_custom_call.1} parent=1 // pred_fallthru
      _
    // Predicated region
    $region22: #{tpu_custom_call.1} parent=1 // pred_check
      _
    $region23: #{tpu_custom_call.1} parent=1 // pred_check_branch
      %134 = sbr.rel (0) target = $region25
    $region24: #{tpu_custom_call.1} parent=1 // pred_region
      %135 = dma.done [#allocation4], 512
    $region25: #{tpu_custom_call.1} parent=1 // pred_fallthru
      _
    %136 = vsyncpa [#allocation3], 1
    %137 = vsyncpa [#allocation4], 1

</llo_original>
